<compile_context>
chip_gen: v7x
topology: tpu7x:2x2x1
jax: 0.10.0
libtpu: 0.0.40
codegen_flags: <defaults>
</compile_context>

<pallas_src>
import functools

import jax
import jax.numpy as jnp
from jax import lax
from jax.experimental import pallas as pl
from jax.experimental.pallas import tpu as pltpu

_GUMBEL_EPS = 1e-20


# ---------------------------------------------------------------------------
# helpers
# ---------------------------------------------------------------------------
def _pick_batch_tile(batch, d, rows):
    """Rows of the streamed f32 x tile.

    Small batches use a single full-extent tile (no 128-lane constraint on the
    output block).  Large batches use a 128-multiple tile sized against a
    12 MiB budget (fits v5e's 16 MiB default scoped VMEM; well under v6e/v7x).
    """
    if batch <= 1024:
        return batch
    budget = 12 << 20
    fixed = 2 * rows * d * 4                       # resident m, double-buffered
    avail = max(budget - fixed, 4 << 20)
    tb = avail // (2 * (d * 4 + rows * 4))         # x tile + sel block, 2 buffers
    tb = max(128, min(2048, (tb // 128) * 128))    # lane-dense sel output
    # TODO(synk): for very wide D (feature dim >~64K) add a feature-axis grid
    # dim with f32 accumulation so the x block becomes (TB, TD) and TB can drop
    # below 128 without violating the lane constraint.
    return tb


# ---------------------------------------------------------------------------
# Pallas kernels
# ---------------------------------------------------------------------------
def _gumbel_softmax_kernel(z_ref, m_ref, *, hard):
    """Row softmax of pre-scaled noisy logits; optional hard one-hot."""
    z = z_ref[...]
    z = z - jnp.max(z, axis=-1, keepdims=True)
    e = jnp.exp(z)
    m = e / jnp.sum(e, axis=-1, keepdims=True)          # exact f32 denominator
    if hard:
        r, d = m.shape
        cols = lax.broadcasted_iota(jnp.int32, (r, d), 1)
        mx = jnp.max(m, axis=-1, keepdims=True)
        # first index achieving the max (matches torch .max tie-break)
        idx = jnp.min(jnp.where(m == mx, cols, d), axis=-1, keepdims=True)
        m = jnp.where(cols == idx, 1.0, 0.0).astype(jnp.float32)
    m_ref[...] = m


def _select_kernel(m_ref, x_ref, sel_ref):
    """selected^T = m @ x_tile^T : contract the feature axis directly.

    Output block is lane-dense (rows, batch_tile); no transposed operand is
    materialized.  x stays in its streamed dtype until just before the MXU.
    """
    sel_ref[...] = lax.dot_general(
        m_ref[...], x_ref[...].astype(jnp.float32),
        dimension_numbers=(((1,), (1,)), ((), ())),
        preferred_element_type=jnp.float32,
    )


def concrete_select_stacked(x, z, hard):
    """x:(B,D) f32, z:(R,D) f32 pre-scaled logits+gumbel (already / temp).

    Returns sel_t:(R,B) = m @ x^T and m:(R,D).  R may stack several selectors.
    """
    B, D = x.shape
    R = z.shape[0]
    assert z.shape[1] == D

    # (1) tiny one-shot gumbel-softmax kernel -> m
    m = pl.pallas_call(
        functools.partial(_gumbel_softmax_kernel, hard=bool(hard)),
        out_shape=jax.ShapeDtypeStruct((R, D), jnp.float32),
        grid=(1,),
        in_specs=[pl.BlockSpec((R, D), lambda i: (0, 0))],
        out_specs=pl.BlockSpec((R, D), lambda i: (0, 0)),
    )(z)

    # (2) batched selection matmul; batch axis is "parallel" (megacore-friendly,
    # no step-0 cold path, m is just a resident input).
    TB = _pick_batch_tile(B, D, R)
    grid = (pl.cdiv(B, TB),)
    sel_t = pl.pallas_call(
        _select_kernel,
        out_shape=jax.ShapeDtypeStruct((R, B), jnp.float32),
        grid=grid,
        in_specs=[
            pl.BlockSpec((R, D), lambda i: (0, 0)),    # m (resident)
            pl.BlockSpec((TB, D), lambda i: (i, 0)),   # x tile, streamed unpadded
        ],
        out_specs=pl.BlockSpec((R, TB), lambda i: (0, i)),   # lane-dense batch
        compiler_params=pltpu.CompilerParams(
            dimension_semantics=("parallel",),
            vmem_limit_bytes=32 << 20,
        ),
    )(m, x)
    return sel_t, m


# ---------------------------------------------------------------------------
# host-side glue (tiny (V, D) arrays + python-float temperature schedule)
# ---------------------------------------------------------------------------
def _gumbel_noise(key, shape):
    u = jax.random.uniform(key, shape, dtype=jnp.float32)
    return -jnp.log(-jnp.log(u + _GUMBEL_EPS) + _GUMBEL_EPS)


def _anneal_temp(epoch, n_epochs, start_temp, min_temp):
    annealed = start_temp * (min_temp / start_temp) ** (float(epoch) / float(n_epochs))
    return max(min_temp, annealed)


def _prescaled_logits(logits, epoch, seed, *, feat_idx, xa_corr, n_epochs,
                      start_temp, min_temp, corr_weight, start_point):
    """(logits * corr_scale + gumbel) / temp on the tiny (V, D) array."""
    V, D = logits.shape
    temp = _anneal_temp(epoch, n_epochs, start_temp, min_temp)
    z = logits.astype(jnp.float32)
    if epoch >= start_point * n_epochs:
        corr = jnp.zeros((D,), jnp.float32).at[feat_idx].set(
            xa_corr[feat_idx].astype(jnp.float32))
        scale = jnp.exp(corr_weight * jnp.abs(corr)).reshape(1, D)
        z = z * scale
    g = _gumbel_noise(jax.random.PRNGKey(seed), (V, D))
    return (z + g) * jnp.float32(1.0 / temp)


# ---------------------------------------------------------------------------
# ConcreteSelector forward (single selector)
# ---------------------------------------------------------------------------
def concrete_selector_forward(
    x,
    epoch,
    seed,
    *,
    logits,
    feat_idx,
    xa_corr,
    n_epochs,
    start_temp=10.0,
    min_temp=0.1,
    corr_weight=2.0,
    start_point=0.5,
    training=True,
):
    z = _prescaled_logits(
        logits, epoch, seed, feat_idx=feat_idx, xa_corr=xa_corr,
        n_epochs=n_epochs, start_temp=start_temp, min_temp=min_temp,
        corr_weight=corr_weight, start_point=start_point)
    hard = not training
    sel_t, m = concrete_select_stacked(x.astype(jnp.float32), z, hard)
    # NOTE: downstream predictors could consume (V, B) directly; a single cheap
    # transpose back to the torch (B, V) layout is kept here for API parity.
    selected = sel_t.T
    new_feat_idx = feat_idx
    if not training:
        new_feat_idx = jnp.argmax(m, axis=1)
    return selected, m, new_feat_idx


# ---------------------------------------------------------------------------
# CSCR-level forward: both selectors fused into ONE pass over x
# ---------------------------------------------------------------------------
def cscr_forward(x, a, epoch, *, selector_c, selector_p, n_epochs, training=True,
                 start_temp=10.0, min_temp=0.1, corr_weight=2.0, start_point=0.5):
    kw = dict(n_epochs=n_epochs, start_temp=start_temp, min_temp=min_temp,
              corr_weight=corr_weight, start_point=start_point)
    zc = _prescaled_logits(selector_c["logits"], epoch, selector_c["seed"],
                           feat_idx=selector_c["feat_idx"],
                           xa_corr=selector_c["xa_corr"], **kw)
    zp = _prescaled_logits(selector_p["logits"], epoch, selector_p["seed"],
                           feat_idx=selector_p["feat_idx"],
                           xa_corr=selector_p["xa_corr"], **kw)
    vc, vp = zc.shape[0], zp.shape[0]

    # Fused: one m-kernel + one streamed matmul over x for BOTH selectors.
    z = jnp.concatenate([zc, zp], axis=0)
    sel_t, m = concrete_select_stacked(x.astype(jnp.float32), z, hard=not training)

    sel = sel_t.T                       # single transpose for the fused output
    xc, xp = sel[:, :vc], sel[:, vc:vc + vp]
    mc, mp = m[:vc], m[vc:vc + vp]
    # TODO(synk): predictor_y(xc, xp, a) and predictor_a(xp, a) are injected
    # sub-modules with unspecified architectures in the reference; not reproduced.
    return xc, xp, mc, mp


# ---------------------------------------------------------------------------
# Demo
# ---------------------------------------------------------------------------
if __name__ == "__main__":
    x_dim, var_num, batch, n_epochs = 32, 8, 4, 10

    root = jax.random.PRNGKey(0)
    k = jax.random.split(root, 6)

    logits_c = jax.random.uniform(k[0], (var_num, x_dim), dtype=jnp.float32)
    logits_p = jax.random.uniform(k[1], (var_num, x_dim), dtype=jnp.float32)
    feat_idx = jax.random.randint(k[2], (var_num,), 0, x_dim)
    xa_corr = jax.random.uniform(k[3], (x_dim,), dtype=jnp.float32)
    x = jax.random.normal(k[4], (batch, x_dim), dtype=jnp.float32)
    a = jax.random.bernoulli(k[5], 0.5, (batch, 1)).astype(jnp.float32)

    # training branch (soft concrete, epoch < start_point * n_epochs)
    sel_soft, m_soft, _ = concrete_selector_forward(
        x, epoch=2, seed=123, logits=logits_c, feat_idx=feat_idx,
        xa_corr=xa_corr, n_epochs=n_epochs, training=True)

    # eval branch with correlation scaling (hard one-hot)
    sel_hard, m_hard, new_feat_idx = concrete_selector_forward(
        x, epoch=8, seed=456, logits=logits_c, feat_idx=feat_idx,
        xa_corr=xa_corr, n_epochs=n_epochs, training=False)

    # CSCR-level forward: both selectors fused over the same x
    xc, xp, mc, mp = cscr_forward(
        x, a, epoch=2, n_epochs=n_epochs, training=True,
        selector_c=dict(seed=11, logits=logits_c, feat_idx=feat_idx, xa_corr=xa_corr),
        selector_p=dict(seed=22, logits=logits_p, feat_idx=feat_idx, xa_corr=xa_corr))

    # unfused single-selector path with the same seed must match the fused path
    xc_ref, mc_ref, _ = concrete_selector_forward(
        x, epoch=2, seed=11, logits=logits_c, feat_idx=feat_idx,
        xa_corr=xa_corr, n_epochs=n_epochs, training=True)

    jax.block_until_ready(
        (sel_soft, m_soft, sel_hard, m_hard, new_feat_idx,
         xc, xp, mc, mp, xc_ref, mc_ref))

    assert sel_soft.shape == (batch, var_num) and m_soft.shape == (var_num, x_dim)
    assert xc.shape == (batch, var_num) and xp.shape == (batch, var_num)
    assert mc.shape == (var_num, x_dim) and mp.shape == (var_num, x_dim)
    assert bool(jnp.all(jnp.isfinite(sel_soft))) and bool(jnp.all(jnp.isfinite(sel_hard)))
    assert bool(jnp.all(jnp.isfinite(xc))) and bool(jnp.all(jnp.isfinite(xp)))
    # soft rows sum to ~1 (exact f32 softmax denominator)
    assert bool(jnp.allclose(jnp.sum(m_soft, axis=1), 1.0, atol=1e-4))
    # hard rows are exact one-hots
    assert bool(jnp.allclose(jnp.sum(m_hard, axis=1), 1.0))
    assert bool(jnp.all(jnp.max(m_hard, axis=1) == 1.0))
    # soft selected matches x @ m_soft.T (tolerance covers MXU operand rounding)
    assert bool(jnp.allclose(sel_soft, x @ m_soft.T, atol=2e-2, rtol=2e-2))
    # hard selected == gather of x columns at the argmax features
    assert bool(jnp.allclose(sel_hard, x[:, new_feat_idx], atol=2e-2, rtol=2e-2))
    # fused CSCR path agrees with the standalone selector
    assert bool(jnp.allclose(xc, xc_ref, atol=1e-4))
    assert bool(jnp.allclose(mc, mc_ref, atol=1e-6))

    print("KERNEL_OK")
</pallas_src>

<mosaic_0001>
module attributes {stable_mosaic.version = 11 : i64} {
  func.func @_gumbel_softmax_kernel(%arg0: i32, %arg1: memref<8x32xf32, #tpu.memory_space<vmem>>, %arg2: memref<8x32xf32, #tpu.memory_space<vmem>>) attributes {dimension_semantics = [#tpu.dimension_semantics<arbitrary>], iteration_bounds = array<i64: 1>, scalar_prefetch = 0 : i64, scratch_operands = 0 : i64, tpu.core_type = #tpu.core_type<tc>, window_params = [{pipeline_mode = #tpu.pipeline_mode<synchronous>, transform_indices = @transform_0, window_bounds = array<i64: 8, 32>}, {pipeline_mode = #tpu.pipeline_mode<synchronous>, transform_indices = @transform_1, window_bounds = array<i64: 8, 32>}]} {
    %c0 = arith.constant 0 : index
    %c0_0 = arith.constant 0 : index
    %0 = vector.load %arg1[%c0, %c0_0] : memref<8x32xf32, #tpu.memory_space<vmem>>, vector<8x32xf32>
    %cst = arith.constant dense<0xFF800000> : vector<8xf32>
    %1 = vector.multi_reduction <maximumf>, %0, %cst [1] : vector<8x32xf32> to vector<8xf32>
    %2 = vector.shape_cast %1 : vector<8xf32> to vector<8x1xf32>
    %3 = vector.broadcast %2 : vector<8x1xf32> to vector<8x32xf32>
    %4 = arith.subf %0, %3 : vector<8x32xf32>
    %5 = math.exp %4 : vector<8x32xf32>
    %cst_1 = arith.constant dense<0.000000e+00> : vector<8xf32>
    %6 = vector.multi_reduction <add>, %5, %cst_1 [1] : vector<8x32xf32> to vector<8xf32>
    %7 = vector.shape_cast %6 : vector<8xf32> to vector<8x1xf32>
    %8 = vector.broadcast %7 : vector<8x1xf32> to vector<8x32xf32>
    %9 = arith.divf %5, %8 : vector<8x32xf32>
    %c0_2 = arith.constant 0 : index
    %c0_3 = arith.constant 0 : index
    %10 = vector.load %arg2[%c0_2, %c0_3] : memref<8x32xf32, #tpu.memory_space<vmem>>, vector<8x32xf32>
    tpu.vector_store %arg2[%c0_2, %c0_3], %9 {strides = array<i32>} : memref<8x32xf32, #tpu.memory_space<vmem>>, vector<8x32xf32>,
    return
  }
  func.func @transform_0(%arg0: i32) -> (i32, i32) {
    %c0_i32 = arith.constant 0 : i32
    %c0_i32_0 = arith.constant 0 : i32
    %c0_i32_1 = arith.constant 0 : i32
    return %c0_i32, %c0_i32_0 : i32, i32
  }
  func.func @transform_1(%arg0: i32) -> (i32, i32) {
    %c0_i32 = arith.constant 0 : i32
    %c0_i32_0 = arith.constant 0 : i32
    %c0_i32_1 = arith.constant 0 : i32
    return %c0_i32, %c0_i32_0 : i32, i32
  }
}

</mosaic_0001>

<llo_original>
// kernel: tpu_custom_call.1
$region0: #{tpu_custom_call.1}
  #allocation0 [shape = 'u32[]', space=smem, size = 0x4, offset = 0x4, fixed_abs, tag = 'smem constant byte address 0x4 - core index']
  #allocation1 [shape = 'u32[144,128]{1,0:T(1,128)}', space=vmem, size = 0x12000, scoped, tag = 'internal scratch']
  %s0 = inlined_call_operand.hbm [shape: f32[8,32], index: 0, kind: input, shape index: {}]
  %s1 = inlined_call_operand.hbm [shape: f32[8,32], index: 1, kind: output, shape index: {}]
  %s2 = sld [smem:[#allocation0]]
  $region18: #{tpu_custom_call.1} parent=0
    _
  %s4 = ssub.s32 1, %s2
  %s5 = scalar_select 0, %s4, %s2
  $region1: #{tpu_custom_call.1} parent=0
    #allocation2 [shape = 'u8[4096]{0}', space=vmem, size = 0x1000, scoped, tag = 'input window, operand 0, single buffered']
    #allocation3 [shape = 's32[1]{0}', space=sflag, size = 0x4, scoped, tag = 'scoped memory for tpu_custom_call.1']
    #allocation4 [shape = 's32[1]{0}', space=sflag, size = 0x4, scoped, tag = 'scoped memory for tpu_custom_call.1']
    #allocation5 [shape = 'u8[4096]{0}', space=vmem, size = 0x1000, scoped, tag = 'output window, operand 0, single buffered']
    %6 = vsyncpa [#allocation3], 0
    %7 = vsyncpa [#allocation4], 0
    // Predicated region
    $region2: #{tpu_custom_call.1} parent=1 // pred_check
      _
    $region3: #{tpu_custom_call.1} parent=1 // pred_check_branch
      %9 = sbr.rel (0) target = $region5
    $region4: #{tpu_custom_call.1} parent=1 // pred_region
      %s11 = ssub.s32 128, 128
      %12 = vsyncadd [#allocation3], %s11
      %s14 = sshll.u32 [#allocation2], 4
      %s15 = int_to_ptr.vmem [resolvable:$true] %s14
      %17 = dma.hbm_to_vmem [thread:$0]  %s0, 128, %s15, [#allocation3]
    $region5: #{tpu_custom_call.1} parent=1 // pred_fallthru
      _
    // Predicated region
    $region6: #{tpu_custom_call.1} parent=1 // pred_check
      _
    $region7: #{tpu_custom_call.1} parent=1 // pred_check_branch
      %19 = sbr.rel (0) target = $region9
    $region8: #{tpu_custom_call.1} parent=1 // pred_region
      %20 = dma.done [#allocation3], 128
    $region9: #{tpu_custom_call.1} parent=1 // pred_fallthru
      _
    %v21 = vld [vmem:[#allocation2] sm:$0xff]
    %vm22 = vcmask 261120
    %v23 = vsel %vm22, %v21, -inf
    %24 = vmax.xlane.f32.xlu0 %v23
    %v25 = vpop.xlane.xlu0 %24
    %v26 = vsub.f32 %v21, %v25
    %v27 = vmul.f32 %v26, 1.442695
    %v28 = vpow.pop %v27
    %v29 = vsel %vm22, %v28, 0.0
    %30 = vadd.xlane.f32.xlu0 %v29
    %v31 = vpop.xlane.xlu0 %30
    %v32 = vrcp.pop %v31
    %v33 = vmul.f32 %v28, %v32
    %34 = vst.msk [vmem:[#allocation5] sm:$0xff] %vm22, %v33
    // Predicated region
    $region10: #{tpu_custom_call.1} parent=1 // pred_check
      _
    $region11: #{tpu_custom_call.1} parent=1 // pred_check_branch
      %36 = sbr.rel (0) target = $region13
    $region12: #{tpu_custom_call.1} parent=1 // pred_region
      %s38 = ssub.s32 128, 128
      %39 = vsyncadd [#allocation4], %s38
      %s41 = sshll.u32 [#allocation5], 4
      %s42 = int_to_ptr.vmem [resolvable:$true] %s41
      %44 = dma.vmem_to_hbm [thread:$0]  %s42, 128, %s1, [#allocation4]
    $region13: #{tpu_custom_call.1} parent=1 // pred_fallthru
      _
    // Predicated region
    $region14: #{tpu_custom_call.1} parent=1 // pred_check
      _
    $region15: #{tpu_custom_call.1} parent=1 // pred_check_branch
      %46 = sbr.rel (0) target = $region17
    $region16: #{tpu_custom_call.1} parent=1 // pred_region
      %47 = dma.done [#allocation4], 128
    $region17: #{tpu_custom_call.1} parent=1 // pred_fallthru
      _
    %48 = vsyncpa [#allocation3], 1
    %49 = vsyncpa [#allocation4], 1

</llo_original>
